<compile_context>
chip_gen: v6e
topology: v6e:2x2x1
jax: 0.10.0
libtpu: 0.0.40
codegen_flags: <defaults>
</compile_context>

<pallas_src>
import jax
import jax.numpy as jnp
from jax.experimental import pallas as pl
from jax.experimental.pallas import tpu as pltpu

HIDDEN = 16          # nn.Linear(2, 16) hidden width (fixed by the module)
EPS = 1e-5


def _round_up(a, m):
    return (a + m - 1) // m * m


def _cdiv(a, b):
    return -(-a // b)


def _make_cnsn_kernel(hw_true):
    """Kernel factory; hw_true is the (static) H*W."""
    # Plain Python floats only: closed-over jnp/np scalars become captured
    # jaxpr constants, which pallas_call rejects.
    inv_n = 1.0 / float(hw_true)
    # Unbiased variance divides by (n-1). n == 1 yields NaN, matching
    # torch.var(unbiased=True) semantics.
    inv_nm1 = float("nan") if hw_true <= 1 else 1.0 / float(hw_true - 1)

    def kernel(x_ref, p_ref, o_ref):
        # x_ref/o_ref: (R_TILE, HW); p_ref: (8, 2*HIDDEN)
        x = x_ref[...].astype(jnp.float32)                          # (R, HW)

        # --- two-pass per-row statistics (numerically stable) ---
        mean = jnp.sum(x, axis=-1, keepdims=True) * inv_n           # (R, 1)
        d = x - mean                                                # (R, HW)
        var = jnp.sum(d * d, axis=-1, keepdims=True) * inv_nm1      # unbiased
        std = jnp.sqrt(var + EPS)                                   # (R, 1)

        # --- fused gate MLPs: lanes [0:16] = fc_mean, lanes [16:32] = fc_std ---
        p = p_ref[...].astype(jnp.float32)                          # (8, 2H)
        h = jnp.maximum(mean * p[0:1, :] + std * p[1:2, :] + p[2:3, :], 0.0)
        # p[4] holds b2_mean in lane 0 and b2_std in lane HIDDEN (zeros
        # elsewhere) so each masked half-sum below picks up its bias once.
        g = h * p[3:4, :] + p[4:5, :]                               # (R, 2H)
        o_mean = jnp.sum(g * p[5:6, :], axis=-1, keepdims=True)     # mean-gate mask
        o_std = jnp.sum(g * p[6:7, :], axis=-1, keepdims=True)      # std-gate mask
        gate_mean = jax.nn.sigmoid(o_mean)                          # (R, 1)
        gate_std = jax.nn.sigmoid(o_std)                            # (R, 1)

        # --- out = (x - mean)*gate_std + mean*gate_mean (matches reference) ---
        o_ref[...] = (d * gate_std + mean * gate_mean).astype(o_ref.dtype)

    return kernel


def _vmem_budget():
    """(target block bytes, vmem_limit cap) tuned per TPU generation."""
    try:
        cap = int(pltpu.get_tpu_info().vmem_capacity_bytes)
    except Exception:
        cap = 64 * 2**20                       # conservative (v7x-sized VMEM)
    if cap >= 100 * 2**20:                     # v5e / v6e: 128 MiB VMEM
        return 8 * 2**20, 80 * 2**20
    return 4 * 2**20, 40 * 2**20               # v7x: 64 MiB VMEM -> stay small


def _row_tiling(rows, hw, itemsize, target_block_bytes):
    """Balanced row tiles: sublane-aligned, >=2 grid steps when rows permit."""
    sub = max(8, 32 // max(int(itemsize), 1))  # 8 (f32) / 16 (bf16) / 32 (i8)
    if rows <= sub:
        return rows, 1                         # single full-rows tile (always legal)
    bytes_per_row = max(hw * int(itemsize), 1)
    max_rows = max(sub, (target_block_bytes // bytes_per_row) // sub * sub)
    rows_s = _round_up(rows, sub)
    n_tiles = max(_cdiv(rows_s, max_rows), 2 if rows_s >= 2 * sub else 1)
    r_tile = _round_up(_cdiv(rows_s, n_tiles), sub)
    return r_tile, _cdiv(rows, r_tile)


def cnsn_forward(x, packed_params):
    """x: (B, C, H, W); packed_params: (8, 2*HIDDEN) float32 (see pack_params)."""
    B, C, H, W = x.shape
    HW = H * W
    rows = B * C

    target_block_bytes, vmem_cap = _vmem_budget()
    r_tile, grid = _row_tiling(rows, HW, x.dtype.itemsize, target_block_bytes)

    x2 = x.reshape(rows, HW)                   # free reshape; no padding copies

    block_bytes = r_tile * HW * x.dtype.itemsize
    f32_block = r_tile * HW * 4
    # 2x in + 2x out double-buffered, plus the in-kernel f32 copies (x, d).
    vmem_limit = int(min(vmem_cap,
                         max(16 * 2**20, 4 * block_bytes + 3 * f32_block + 2 * 2**20)))

    out = pl.pallas_call(
        _make_cnsn_kernel(HW),
        out_shape=jax.ShapeDtypeStruct((rows, HW), x.dtype),
        grid_spec=pltpu.PrefetchScalarGridSpec(
            num_scalar_prefetch=0,
            grid=(grid,),
            in_specs=[
                pl.BlockSpec((r_tile, HW), lambda r: (r, 0)),
                pl.BlockSpec((8, 2 * HIDDEN), lambda r: (0, 0)),
            ],
            out_specs=pl.BlockSpec((r_tile, HW), lambda r: (r, 0)),
        ),
        compiler_params=pltpu.CompilerParams(
            dimension_semantics=("parallel",),
            vmem_limit_bytes=vmem_limit,
        ),
    )(x2, packed_params)

    return out.reshape(B, C, H, W)


def init_selfnorm_params(key):
    """PyTorch-style init for the two SelfNorm MLPs (Linear(2,16)->ReLU->Linear(16,1))."""
    def linear_init(k, out_f, in_f):
        kw, kb = jax.random.split(k)
        bound = 1.0 / float(jnp.sqrt(jnp.float32(in_f)))
        w = jax.random.uniform(kw, (out_f, in_f), jnp.float32, -bound, bound)
        b = jax.random.uniform(kb, (out_f,), jnp.float32, -bound, bound)
        return w, b

    k = jax.random.split(key, 4)
    w1m, b1m = linear_init(k[0], HIDDEN, 2)
    w2m, b2m = linear_init(k[1], 1, HIDDEN)
    w1s, b1s = linear_init(k[2], HIDDEN, 2)
    w2s, b2s = linear_init(k[3], 1, HIDDEN)
    return dict(w1m=w1m, b1m=b1m, w2m=w2m, b2m=b2m,
                w1s=w1s, b1s=b1s, w2s=w2s, b2s=b2s)


def pack_params(p):
    """Pack both MLPs into an (8, 2*HIDDEN) slab: lanes [0:16]=fc_mean, [16:32]=fc_std.
    Rows: 0=w1[:,0] (mean coef), 1=w1[:,1] (std coef), 2=b1, 3=w2[0],
          4=b2 in lane 0 / lane HIDDEN only, 5=mean-gate lane mask,
          6=std-gate lane mask, 7=unused (sublane padding)."""
    packed = jnp.zeros((8, 2 * HIDDEN), jnp.float32)
    packed = packed.at[0, :HIDDEN].set(p["w1m"][:, 0]).at[0, HIDDEN:].set(p["w1s"][:, 0])
    packed = packed.at[1, :HIDDEN].set(p["w1m"][:, 1]).at[1, HIDDEN:].set(p["w1s"][:, 1])
    packed = packed.at[2, :HIDDEN].set(p["b1m"]).at[2, HIDDEN:].set(p["b1s"])
    packed = packed.at[3, :HIDDEN].set(p["w2m"][0]).at[3, HIDDEN:].set(p["w2s"][0])
    packed = packed.at[4, 0].set(p["b2m"][0]).at[4, HIDDEN].set(p["b2s"][0])
    packed = packed.at[5, :HIDDEN].set(1.0)
    packed = packed.at[6, HIDDEN:].set(1.0)
    return packed


def cnsn_reference(x, p):
    """Pure-JAX reference mirroring SelfNorm.forward (eval-mode CNSN)."""
    mean = jnp.mean(x, axis=(2, 3))                               # (B, C)
    std = jnp.sqrt(jnp.var(x, axis=(2, 3), ddof=1) + EPS)         # (B, C)
    stats = jnp.stack([mean, std], axis=-1)                       # (B, C, 2)

    def mlp(w1, b1, w2, b2):
        h = jnp.maximum(stats @ w1.T + b1, 0.0)                   # (B, C, 16)
        return jax.nn.sigmoid(h @ w2.T + b2)[..., 0]              # (B, C)

    mw = mlp(p["w1m"], p["b1m"], p["w2m"], p["b2m"])
    sw = mlp(p["w1s"], p["b1s"], p["w2s"], p["b2s"])
    mean4 = mean[:, :, None, None]
    std4 = std[:, :, None, None]
    x_norm = (x - mean4) / std4
    return x_norm * (std4 * sw[:, :, None, None]) + mean4 * mw[:, :, None, None]


if __name__ == "__main__":
    key = jax.random.PRNGKey(0)
    kx, kx2, kp = jax.random.split(key, 3)

    params = init_selfnorm_params(kp)
    packed = pack_params(params)

    # Case 1: aligned shapes (B=2, C=4, H=W=16 -> HW=256, rows=8).
    B, C, H, W = 2, 4, 16, 16
    x = jax.random.normal(kx, (B, C, H, W), jnp.float32) * 2.0 + 0.5
    out = jax.block_until_ready(cnsn_forward(x, packed))
    ref = cnsn_reference(x, params)
    assert out.shape == x.shape and out.dtype == x.dtype
    assert jnp.allclose(out, ref, atol=1e-4, rtol=1e-4), "mismatch vs reference (aligned)"

    # Case 2: unaligned shapes (B=2, C=3, H=W=14 -> HW=196, rows=6) — exercises
    # the full-HW lane block and the non-multiple-of-8 row dim with no padding.
    B2, C2, H2, W2 = 2, 3, 14, 14
    x2 = jax.random.normal(kx2, (B2, C2, H2, W2), jnp.float32) * 1.5 - 0.25
    out2 = jax.block_until_ready(cnsn_forward(x2, packed))
    ref2 = cnsn_reference(x2, params)
    assert out2.shape == x2.shape and out2.dtype == x2.dtype
    assert jnp.allclose(out2, ref2, atol=1e-4, rtol=1e-4), "mismatch vs reference (unaligned)"

    print("KERNEL_OK")
</pallas_src>

<mosaic_0001>
module attributes {stable_mosaic.version = 11 : i64} {
  func.func @kernel(%arg0: i32, %arg1: memref<8x256xf32, #tpu.memory_space<vmem>>, %arg2: memref<8x32xf32, #tpu.memory_space<vmem>>, %arg3: memref<8x256xf32, #tpu.memory_space<vmem>>) attributes {dimension_semantics = [#tpu.dimension_semantics<parallel>], iteration_bounds = array<i64: 1>, scalar_prefetch = 0 : i64, scratch_operands = 0 : i64, tpu.core_type = #tpu.core_type<tc>, window_params = [{transform_indices = @transform_0, window_bounds = array<i64: 8, 256>}, {pipeline_mode = #tpu.pipeline_mode<synchronous>, transform_indices = @transform_1, window_bounds = array<i64: 8, 32>}, {transform_indices = @transform_2, window_bounds = array<i64: 8, 256>}]} {
    %c0 = arith.constant 0 : index
    %c0_0 = arith.constant 0 : index
    %0 = vector.load %arg1[%c0, %c0_0] : memref<8x256xf32, #tpu.memory_space<vmem>>, vector<8x256xf32>
    %cst = arith.constant dense<0.000000e+00> : vector<8xf32>
    %1 = vector.multi_reduction <add>, %0, %cst [1] : vector<8x256xf32> to vector<8xf32>
    %2 = vector.shape_cast %1 : vector<8xf32> to vector<8x1xf32>
    %cst_1 = arith.constant 3.906250e-03 : f32
    %3 = vector.broadcast %cst_1 : f32 to vector<8x1xf32>
    %4 = arith.mulf %2, %3 : vector<8x1xf32>
    %5 = vector.broadcast %4 : vector<8x1xf32> to vector<8x256xf32>
    %6 = arith.subf %0, %5 : vector<8x256xf32>
    %7 = arith.mulf %6, %6 : vector<8x256xf32>
    %cst_2 = arith.constant dense<0.000000e+00> : vector<8xf32>
    %8 = vector.multi_reduction <add>, %7, %cst_2 [1] : vector<8x256xf32> to vector<8xf32>
    %9 = vector.shape_cast %8 : vector<8xf32> to vector<8x1xf32>
    %cst_3 = arith.constant 0.00392156886 : f32
    %10 = vector.broadcast %cst_3 : f32 to vector<8x1xf32>
    %11 = arith.mulf %9, %10 : vector<8x1xf32>
    %cst_4 = arith.constant 9.99999974E-6 : f32
    %12 = vector.broadcast %cst_4 : f32 to vector<8x1xf32>
    %13 = arith.addf %11, %12 : vector<8x1xf32>
    %14 = math.sqrt %13 : vector<8x1xf32>
    %c0_5 = arith.constant 0 : index
    %c0_6 = arith.constant 0 : index
    %15 = vector.load %arg2[%c0_5, %c0_6] : memref<8x32xf32, #tpu.memory_space<vmem>>, vector<8x32xf32>
    %16 = vector.extract_strided_slice %15 {offsets = [0, 0], sizes = [1, 32], strides = [1, 1]} : vector<8x32xf32> to vector<1x32xf32>
    %17 = vector.broadcast %4 : vector<8x1xf32> to vector<8x32xf32>
    %18 = vector.broadcast %16 : vector<1x32xf32> to vector<8x32xf32>
    %19 = arith.mulf %17, %18 : vector<8x32xf32>
    %20 = vector.extract_strided_slice %15 {offsets = [1, 0], sizes = [1, 32], strides = [1, 1]} : vector<8x32xf32> to vector<1x32xf32>
    %21 = vector.broadcast %14 : vector<8x1xf32> to vector<8x32xf32>
    %22 = vector.broadcast %20 : vector<1x32xf32> to vector<8x32xf32>
    %23 = arith.mulf %21, %22 : vector<8x32xf32>
    %24 = arith.addf %19, %23 : vector<8x32xf32>
    %25 = vector.extract_strided_slice %15 {offsets = [2, 0], sizes = [1, 32], strides = [1, 1]} : vector<8x32xf32> to vector<1x32xf32>
    %26 = vector.broadcast %25 : vector<1x32xf32> to vector<8x32xf32>
    %27 = arith.addf %24, %26 : vector<8x32xf32>
    %cst_7 = arith.constant 0.000000e+00 : f32
    %28 = vector.broadcast %cst_7 : f32 to vector<8x32xf32>
    %29 = arith.maximumf %27, %28 : vector<8x32xf32>
    %30 = vector.extract_strided_slice %15 {offsets = [3, 0], sizes = [1, 32], strides = [1, 1]} : vector<8x32xf32> to vector<1x32xf32>
    %31 = vector.broadcast %30 : vector<1x32xf32> to vector<8x32xf32>
    %32 = arith.mulf %29, %31 : vector<8x32xf32>
    %33 = vector.extract_strided_slice %15 {offsets = [4, 0], sizes = [1, 32], strides = [1, 1]} : vector<8x32xf32> to vector<1x32xf32>
    %34 = vector.broadcast %33 : vector<1x32xf32> to vector<8x32xf32>
    %35 = arith.addf %32, %34 : vector<8x32xf32>
    %36 = vector.extract_strided_slice %15 {offsets = [5, 0], sizes = [1, 32], strides = [1, 1]} : vector<8x32xf32> to vector<1x32xf32>
    %37 = vector.broadcast %36 : vector<1x32xf32> to vector<8x32xf32>
    %38 = arith.mulf %35, %37 : vector<8x32xf32>
    %cst_8 = arith.constant dense<0.000000e+00> : vector<8xf32>
    %39 = vector.multi_reduction <add>, %38, %cst_8 [1] : vector<8x32xf32> to vector<8xf32>
    %40 = vector.shape_cast %39 : vector<8xf32> to vector<8x1xf32>
    %41 = vector.extract_strided_slice %15 {offsets = [6, 0], sizes = [1, 32], strides = [1, 1]} : vector<8x32xf32> to vector<1x32xf32>
    %42 = vector.broadcast %41 : vector<1x32xf32> to vector<8x32xf32>
    %43 = arith.mulf %35, %42 : vector<8x32xf32>
    %cst_9 = arith.constant dense<0.000000e+00> : vector<8xf32>
    %44 = vector.multi_reduction <add>, %43, %cst_9 [1] : vector<8x32xf32> to vector<8xf32>
    %45 = vector.shape_cast %44 : vector<8xf32> to vector<8x1xf32>
    %46 = arith.negf %40 : vector<8x1xf32>
    %47 = math.exp %46 : vector<8x1xf32>
    %cst_10 = arith.constant 1.000000e+00 : f32
    %48 = vector.broadcast %cst_10 : f32 to vector<8x1xf32>
    %49 = arith.addf %48, %47 : vector<8x1xf32>
    %50 = arith.divf %48, %49 : vector<8x1xf32>
    %51 = arith.negf %45 : vector<8x1xf32>
    %52 = math.exp %51 : vector<8x1xf32>
    %cst_11 = arith.constant 1.000000e+00 : f32
    %53 = vector.broadcast %cst_11 : f32 to vector<8x1xf32>
    %54 = arith.addf %53, %52 : vector<8x1xf32>
    %55 = arith.divf %53, %54 : vector<8x1xf32>
    %56 = vector.broadcast %55 : vector<8x1xf32> to vector<8x256xf32>
    %57 = arith.mulf %6, %56 : vector<8x256xf32>
    %58 = arith.mulf %4, %50 : vector<8x1xf32>
    %59 = vector.broadcast %58 : vector<8x1xf32> to vector<8x256xf32>
    %60 = arith.addf %57, %59 : vector<8x256xf32>
    %c0_12 = arith.constant 0 : index
    %c0_13 = arith.constant 0 : index
    %61 = vector.load %arg3[%c0_12, %c0_13] : memref<8x256xf32, #tpu.memory_space<vmem>>, vector<8x256xf32>
    tpu.vector_store %arg3[%c0_12, %c0_13], %60 {strides = array<i32>} : memref<8x256xf32, #tpu.memory_space<vmem>>, vector<8x256xf32>,
    return
  }
  func.func @transform_0(%arg0: i32) -> (i32, i32) {
    %c0_i32 = arith.constant 0 : i32
    %c0_i32_0 = arith.constant 0 : i32
    return %arg0, %c0_i32 : i32, i32
  }
  func.func @transform_1(%arg0: i32) -> (i32, i32) {
    %c0_i32 = arith.constant 0 : i32
    %c0_i32_0 = arith.constant 0 : i32
    %c0_i32_1 = arith.constant 0 : i32
    return %c0_i32, %c0_i32_0 : i32, i32
  }
  func.func @transform_2(%arg0: i32) -> (i32, i32) {
    %c0_i32 = arith.constant 0 : i32
    %c0_i32_0 = arith.constant 0 : i32
    return %arg0, %c0_i32 : i32, i32
  }
}

</mosaic_0001>

<llo_original>
// kernel: tpu_custom_call.1
$region0: #{tpu_custom_call.1}
  #allocation0 [shape = 'u32[]', space=smem, size = 0x4, offset = 0x4, fixed_abs, tag = 'smem constant byte address 0x4 - core index']
  #allocation1 [shape = 'u32[144,128]{1,0:T(1,128)}', space=vmem, size = 0x12000, scoped, tag = 'internal scratch']
  %s0 = inlined_call_operand.hbm [shape: f32[8,256], index: 0, kind: input, shape index: {}]
  %s1 = inlined_call_operand.hbm [shape: f32[8,32], index: 1, kind: input, shape index: {}]
  %s2 = inlined_call_operand.hbm [shape: f32[8,256], index: 2, kind: output, shape index: {}]
  %s3 = sld [smem:[#allocation0]]
  $region26: #{tpu_custom_call.1} parent=0
    _
  %s5 = ssub.s32 1, %s3
  %s6 = scalar_select 0, %s5, %s3
  $region1: #{tpu_custom_call.1} parent=0
    #allocation2 [shape = 'u8[8192]{0}', space=vmem, size = 0x2000, scoped, tag = 'input window, operand 0, single buffered']
    #allocation3 [shape = 's32[1]{0}', space=sflag, size = 0x4, scoped, tag = 'scoped memory for tpu_custom_call.1']
    #allocation4 [shape = 's32[1]{0}', space=sflag, size = 0x4, scoped, tag = 'scoped memory for tpu_custom_call.1']
    #allocation5 [shape = 'u8[4096]{0}', space=vmem, size = 0x1000, scoped, tag = 'input window, operand 1, single buffered']
    #allocation6 [shape = 's32[1]{0}', space=sflag, size = 0x4, scoped, tag = 'scoped memory for tpu_custom_call.1']
    #allocation7 [shape = 'u8[8192]{0}', space=vmem, size = 0x2000, scoped, tag = 'output window, operand 0, single buffered']
    %7 = vsyncpa [#allocation3], 0
    %8 = vsyncpa [#allocation6], 0
    %9 = vsyncpa [#allocation4], 0
    // Predicated region
    $region2: #{tpu_custom_call.1} parent=1 // pred_check
      _
    $region3: #{tpu_custom_call.1} parent=1 // pred_check_branch
      %11 = sbr.rel (0) target = $region5
    $region4: #{tpu_custom_call.1} parent=1 // pred_region
      %s13 = ssub.s32 256, 256
      %14 = vsyncadd [#allocation3], %s13
      %s16 = sshll.u32 [#allocation2], 4
      %s17 = int_to_ptr.vmem [resolvable:$true] %s16
      %19 = dma.hbm_to_vmem [thread:$0]  %s0, 256, %s17, [#allocation3]
    $region5: #{tpu_custom_call.1} parent=1 // pred_fallthru
      _
    // Predicated region
    $region6: #{tpu_custom_call.1} parent=1 // pred_check
      _
    $region7: #{tpu_custom_call.1} parent=1 // pred_check_branch
      %21 = sbr.rel (0) target = $region9
    $region8: #{tpu_custom_call.1} parent=1 // pred_region
      %s23 = ssub.s32 128, 128
      %24 = vsyncadd [#allocation6], %s23
      %s26 = sshll.u32 [#allocation5], 4
      %s27 = int_to_ptr.vmem [resolvable:$true] %s26
      %29 = dma.hbm_to_vmem [thread:$0]  %s1, 128, %s27, [#allocation6]
    $region9: #{tpu_custom_call.1} parent=1 // pred_fallthru
      _
    // Predicated region
    $region10: #{tpu_custom_call.1} parent=1 // pred_check
      _
    $region11: #{tpu_custom_call.1} parent=1 // pred_check_branch
      %31 = sbr.rel (0) target = $region13
    $region12: #{tpu_custom_call.1} parent=1 // pred_region
      %32 = dma.done [#allocation3], 256
    $region13: #{tpu_custom_call.1} parent=1 // pred_fallthru
      _
    // Predicated region
    $region14: #{tpu_custom_call.1} parent=1 // pred_check
      _
    $region15: #{tpu_custom_call.1} parent=1 // pred_check_branch
      %34 = sbr.rel (0) target = $region17
    $region16: #{tpu_custom_call.1} parent=1 // pred_region
      %35 = dma.done [#allocation6], 128
    $region17: #{tpu_custom_call.1} parent=1 // pred_fallthru
      _
    %v36 = vld [vmem:[#allocation2] sm:$0xff]
    %v37 = vld [vmem:[#allocation2 + $0x8] sm:$0xff]
    %v38 = vadd.f32 %v36, %v37
    %39 = vadd.xlane.f32.xlu0 %v38
    %v40 = vpop.xlane.xlu0 %39
    %v41 = vmul.f32 %v40, 0.00390625
    %v42 = vsub.f32 %v36, %v41
    %v43 = vsub.f32 %v37, %v41
    %v44 = vmul.f32 %v42, %v42
    %v45 = vmul.f32 %v43, %v43
    %v46 = vadd.f32 %v44, %v45
    %47 = vadd.xlane.f32.xlu0 %v46
    %v48 = vpop.xlane.xlu0 %47
    %v49 = vmul.f32 %v48, 0.003921569
    %v50 = vadd.f32 %v49, 1e-05
    %v51 = vrsqrt.pop %v50
    %v52 = vmul.f32 %v50, %v51
    %vm53 = vcmp.eq.f32.partialorder %v50, inf
    %v54 = vsel %vm53, %v50, %v52
    %vm55 = vcmp.eq.f32.partialorder %v50, 0.0
    %v56 = vand.u32 %v50, 2147483648
    %v57 = vsel %vm55, %v56, %v54
    %v58 = vld [vmem:[#allocation5] sm:$0xff]
    %v59 = vlaneseq
    %v60 = vshrl.u32 %v59, 7
    %v61 = vsub.s32 0, %v60
    %v62 = vrot.slane %v58, %v61
    %v63 = vmul.f32 %v41, %v62
    %v64 = vlaneseq
    %v65 = vshrl.u32 %v64, 7
    %v66 = vsub.s32 1, %v65
    %v67 = vrot.slane %v58, %v66
    %v68 = vmul.f32 %v57, %v67
    %v69 = vadd.f32 %v63, %v68
    %v70 = vlaneseq
    %v71 = vshrl.u32 %v70, 7
    %v72 = vsub.s32 2, %v71
    %v73 = vrot.slane %v58, %v72
    %v74 = vadd.f32 %v69, %v73
    %v75 = vmax.f32 %v74, 0.0
    %v76 = vlaneseq
    %v77 = vshrl.u32 %v76, 7
    %v78 = vsub.s32 3, %v77
    %v79 = vrot.slane %v58, %v78
    %v80 = vmul.f32 %v75, %v79
    %v81 = vlaneseq
    %v82 = vshrl.u32 %v81, 7
    %v83 = vsub.s32 4, %v82
    %v84 = vrot.slane %v58, %v83
    %v85 = vadd.f32 %v80, %v84
    %v86 = vlaneseq
    %v87 = vshrl.u32 %v86, 7
    %v88 = vsub.s32 5, %v87
    %v89 = vrot.slane %v58, %v88
    %v90 = vmul.f32 %v85, %v89
    %vm91 = vcmask 261120
    %v92 = vsel %vm91, %v90, 0.0
    %93 = vadd.xlane.f32.xlu0 %v92
    %v94 = vpop.xlane.xlu0 %93
    %v95 = vlaneseq
    %v96 = vshrl.u32 %v95, 7
    %v97 = vsub.s32 6, %v96
    %v98 = vrot.slane %v58, %v97
    %v99 = vmul.f32 %v85, %v98
    %v100 = vsel %vm91, %v99, 0.0
    %101 = vadd.xlane.f32.xlu0 %v100
    %v102 = vpop.xlane.xlu0 %101
    %v103 = vxor.u32 %v94, 2147483648
    %v104 = vmul.f32 %v103, 1.442695
    %v105 = vpow.pop %v104
    %v106 = vadd.f32 %v105, 1.0
    %v107 = vrcp.pop %v106
    %v108 = vmul.f32 1.0, %v107
    %v109 = vxor.u32 %v102, 2147483648
    %v110 = vmul.f32 %v109, 1.442695
    %v111 = vpow.pop %v110
    %v112 = vadd.f32 %v111, 1.0
    %v113 = vrcp.pop %v112
    %v114 = vmul.f32 1.0, %v113
    %v115 = vmul.f32 %v42, %v114
    %v116 = vmul.f32 %v43, %v114
    %v117 = vmul.f32 %v41, %v108
    %v118 = vadd.f32 %v115, %v117
    %v119 = vadd.f32 %v116, %v117
    %120 = vst [vmem:[#allocation7] sm:$0xff] %v118
    %121 = vst [vmem:[#allocation7 + $0x8] sm:$0xff] %v119
    // Predicated region
    $region18: #{tpu_custom_call.1} parent=1 // pred_check
      _
    $region19: #{tpu_custom_call.1} parent=1 // pred_check_branch
      %123 = sbr.rel (0) target = $region21
    $region20: #{tpu_custom_call.1} parent=1 // pred_region
      %s125 = ssub.s32 256, 256
      %126 = vsyncadd [#allocation4], %s125
      %s128 = sshll.u32 [#allocation7], 4
      %s129 = int_to_ptr.vmem [resolvable:$true] %s128
      %131 = dma.vmem_to_hbm [thread:$0]  %s129, 256, %s2, [#allocation4]
    $region21: #{tpu_custom_call.1} parent=1 // pred_fallthru
      _
    // Predicated region
    $region22: #{tpu_custom_call.1} parent=1 // pred_check
      _
    $region23: #{tpu_custom_call.1} parent=1 // pred_check_branch
      %133 = sbr.rel (0) target = $region25
    $region24: #{tpu_custom_call.1} parent=1 // pred_region
      %134 = dma.done [#allocation4], 256
    $region25: #{tpu_custom_call.1} parent=1 // pred_fallthru
      _
    %135 = vsyncpa [#allocation3], 1
    %136 = vsyncpa [#allocation6], 1
    %137 = vsyncpa [#allocation4], 1

</llo_original>
